<compile_context>
chip_gen: v7x
topology: tpu7x:2x2x1
jax: 0.10.0
libtpu: 0.0.40
codegen_flags: <defaults>
</compile_context>

<pallas_src>
import jax
import jax.numpy as jnp
from jax.experimental import pallas as pl
from jax.experimental.pallas import tpu as pltpu


def _round_up(n, m):
    return ((n + m - 1) // m) * m


def _ds1_kernel(x_ref, xi_ref, eta_ref, o_ref):
    x = x_ref[...]                                   # (bm, D)
    xi = xi_ref[...]                                 # (1, D)
    eta = eta_ref[...]                               # (1, D)

    gamma = eta * eta                                # eta.pow(2), (1, D)
    # log(sigmoid(xi)) on the small (1, D) tile; fold alpha into the exponent
    # so the (bm, D) path is a single fused exp (EUP) instead of exp + mul.
    log_alpha = -jnp.log(jnp.exp(-xi) + 1.0)         # (1, D)
    si = jnp.exp(log_alpha - gamma * x)              # (bm, D), broadcast (1,D)

    row_max = jnp.max(si, axis=-1, keepdims=True)    # (bm, 1)  (XLU reduce)
    inv = pl.reciprocal(row_max + 0.0001, approx=True)  # (bm, 1) on EUP
    o_ref[...] = si * inv


def _choose_block_rows(batch, d_pad, target_tile_bytes):
    """Pick a row-tile so each x tile is ~target bytes, multiple of 8 rows,
    and (for large batches) the grid has >= 2 steps for megacore sharding."""
    bytes_per_row = 4 * d_pad
    br = max(8, (target_tile_bytes // bytes_per_row) // 8 * 8)
    br = min(br, _round_up(batch, 8))
    n_steps = pl.cdiv(batch, br)
    if batch > 16 and n_steps == 1:
        n_steps = 2
    return _round_up(pl.cdiv(batch, n_steps), 8)


def ds1_activate(x, xi, eta, *, target_tile_bytes=4 << 20):
    """x: (B, D) float32; xi, eta: (1, D) float32."""
    B, D = x.shape

    # --- pad D to a lane-dense multiple of 128 -------------------------------
    d_pad = _round_up(D, 128)
    if d_pad != D:
        pad = d_pad - D
        x = jnp.pad(x, ((0, 0), (0, pad)))
        # padded xi lanes -> sigmoid == 0 -> si == 0 there -> never the row max
        xi = jnp.pad(xi, ((0, 0), (0, pad)), constant_values=-1e9)
        eta = jnp.pad(eta, ((0, 0), (0, pad)))

    # --- choose row tile (~4 MiB per x tile) and pad B to a multiple of it ---
    block_rows = _choose_block_rows(B, d_pad, target_tile_bytes)
    b_pad = _round_up(B, block_rows)
    if b_pad != B:
        x = jnp.pad(x, ((0, b_pad - B), (0, 0)))

    grid = (b_pad // block_rows,)

    # double-buffered x-in + out (~4x tile) plus the tiny xi/eta buffers;
    # explicit limit so big tiles also work under the 16 MiB v5e scoped default
    # while staying well inside v7x's 64 MiB physical VMEM.
    tile_bytes = block_rows * d_pad * 4
    vmem_limit = 4 * tile_bytes + 8 * d_pad * 4 + (2 << 20)
    vmem_limit = int(min(max(vmem_limit, 16 << 20), 48 << 20))

    out = pl.pallas_call(
        _ds1_kernel,
        out_shape=jax.ShapeDtypeStruct((b_pad, d_pad), x.dtype),
        grid_spec=pltpu.PrefetchScalarGridSpec(
            num_scalar_prefetch=0,
            grid=grid,
            in_specs=[
                pl.BlockSpec((block_rows, d_pad), lambda i: (i, 0)),  # x tile
                pl.BlockSpec((1, d_pad), lambda i: (0, 0)),           # xi
                pl.BlockSpec((1, d_pad), lambda i: (0, 0)),           # eta
            ],
            out_specs=pl.BlockSpec((block_rows, d_pad), lambda i: (i, 0)),
        ),
        compiler_params=pltpu.CompilerParams(
            dimension_semantics=("parallel",),
            vmem_limit_bytes=vmem_limit,
        ),
    )(x, xi, eta)

    return out[:B, :D]


def ds1_activate_ref(x, xi, eta):
    gamma = eta * eta
    alpha = 1.0 / (jnp.exp(-xi) + 1.0)
    si = alpha * jnp.exp(-gamma * x)
    return si / (jnp.max(si, axis=-1, keepdims=True) + 0.0001)


if __name__ == "__main__":
    key = jax.random.PRNGKey(0)
    k_x, k_xi, k_eta = jax.random.split(key, 3)

    batch, input_dim = 8, 256            # small, tile-aligned test shapes
    x = jax.random.normal(k_x, (batch, input_dim), dtype=jnp.float32)
    # Parameter init matches torch.randn(1, input_dim) * 0.05 (deterministic).
    xi = 0.05 * jax.random.normal(k_xi, (1, input_dim), dtype=jnp.float32)
    eta = 0.05 * jax.random.normal(k_eta, (1, input_dim), dtype=jnp.float32)

    out = ds1_activate(x, xi, eta)
    jax.block_until_ready(out)

    ref = ds1_activate_ref(x, xi, eta)
    assert out.shape == (batch, input_dim)
    # tolerance relaxed for the approximate EUP reciprocal (rel err ~1e-4)
    assert jnp.allclose(out, ref, atol=2e-3, rtol=2e-3), "mismatch vs reference"

    print("KERNEL_OK")
</pallas_src>

<mosaic_0001>
module attributes {stable_mosaic.version = 11 : i64} {
  func.func @_ds1_kernel(%arg0: i32, %arg1: memref<8x256xf32, #tpu.memory_space<vmem>>, %arg2: memref<1x256xf32, #tpu.memory_space<vmem>>, %arg3: memref<1x256xf32, #tpu.memory_space<vmem>>, %arg4: memref<8x256xf32, #tpu.memory_space<vmem>>) attributes {dimension_semantics = [#tpu.dimension_semantics<parallel>], iteration_bounds = array<i64: 1>, scalar_prefetch = 0 : i64, scratch_operands = 0 : i64, tpu.core_type = #tpu.core_type<tc>, window_params = [{transform_indices = @transform_0, window_bounds = array<i64: 8, 256>}, {pipeline_mode = #tpu.pipeline_mode<synchronous>, transform_indices = @transform_1, window_bounds = array<i64: 1, 256>}, {pipeline_mode = #tpu.pipeline_mode<synchronous>, transform_indices = @transform_2, window_bounds = array<i64: 1, 256>}, {transform_indices = @transform_3, window_bounds = array<i64: 8, 256>}]} {
    %c0 = arith.constant 0 : index
    %c0_0 = arith.constant 0 : index
    %0 = vector.load %arg1[%c0, %c0_0] : memref<8x256xf32, #tpu.memory_space<vmem>>, vector<8x256xf32>
    %c0_1 = arith.constant 0 : index
    %c0_2 = arith.constant 0 : index
    %1 = vector.load %arg2[%c0_1, %c0_2] : memref<1x256xf32, #tpu.memory_space<vmem>>, vector<1x256xf32>
    %c0_3 = arith.constant 0 : index
    %c0_4 = arith.constant 0 : index
    %2 = vector.load %arg3[%c0_3, %c0_4] : memref<1x256xf32, #tpu.memory_space<vmem>>, vector<1x256xf32>
    %3 = arith.mulf %2, %2 : vector<1x256xf32>
    %cst = arith.constant 0.000000e+00 : f32
    %4 = vector.broadcast %cst : f32 to vector<1x256xf32>
    %5 = arith.subf %4, %1 : vector<1x256xf32>
    %6 = math.exp %5 : vector<1x256xf32>
    %cst_5 = arith.constant 1.000000e+00 : f32
    %7 = vector.broadcast %cst_5 : f32 to vector<1x256xf32>
    %8 = arith.addf %6, %7 : vector<1x256xf32>
    %9 = math.log %8 : vector<1x256xf32>
    %cst_6 = arith.constant 0.000000e+00 : f32
    %10 = vector.broadcast %cst_6 : f32 to vector<1x256xf32>
    %11 = arith.subf %10, %9 : vector<1x256xf32>
    %12 = vector.broadcast %3 : vector<1x256xf32> to vector<8x256xf32>
    %13 = arith.mulf %12, %0 : vector<8x256xf32>
    %14 = vector.broadcast %11 : vector<1x256xf32> to vector<8x256xf32>
    %15 = arith.subf %14, %13 : vector<8x256xf32>
    %16 = math.exp %15 : vector<8x256xf32>
    %cst_7 = arith.constant dense<0xFF800000> : vector<8xf32>
    %17 = vector.multi_reduction <maximumf>, %16, %cst_7 [1] : vector<8x256xf32> to vector<8xf32>
    %18 = vector.shape_cast %17 : vector<8xf32> to vector<8x1xf32>
    %cst_8 = arith.constant 9.99999974E-5 : f32
    %19 = vector.broadcast %cst_8 : f32 to vector<8x1xf32>
    %20 = arith.addf %18, %19 : vector<8x1xf32>
    %21 = tpu.reciprocal %20 {approx = true} : vector<8x1xf32> -> vector<8x1xf32>
    %22 = vector.broadcast %21 : vector<8x1xf32> to vector<8x256xf32>
    %23 = arith.mulf %16, %22 : vector<8x256xf32>
    %c0_9 = arith.constant 0 : index
    %c0_10 = arith.constant 0 : index
    %24 = vector.load %arg4[%c0_9, %c0_10] : memref<8x256xf32, #tpu.memory_space<vmem>>, vector<8x256xf32>
    tpu.vector_store %arg4[%c0_9, %c0_10], %23 {strides = array<i32>} : memref<8x256xf32, #tpu.memory_space<vmem>>, vector<8x256xf32>,
    return
  }
  func.func @transform_0(%arg0: i32) -> (i32, i32) {
    %c0_i32 = arith.constant 0 : i32
    %c0_i32_0 = arith.constant 0 : i32
    return %arg0, %c0_i32 : i32, i32
  }
  func.func @transform_1(%arg0: i32) -> (i32, i32) {
    %c0_i32 = arith.constant 0 : i32
    %c0_i32_0 = arith.constant 0 : i32
    %c0_i32_1 = arith.constant 0 : i32
    return %c0_i32, %c0_i32_0 : i32, i32
  }
  func.func @transform_2(%arg0: i32) -> (i32, i32) {
    %c0_i32 = arith.constant 0 : i32
    %c0_i32_0 = arith.constant 0 : i32
    %c0_i32_1 = arith.constant 0 : i32
    return %c0_i32, %c0_i32_0 : i32, i32
  }
  func.func @transform_3(%arg0: i32) -> (i32, i32) {
    %c0_i32 = arith.constant 0 : i32
    %c0_i32_0 = arith.constant 0 : i32
    return %arg0, %c0_i32 : i32, i32
  }
}

</mosaic_0001>

<llo_original>
// kernel: tpu_custom_call.1
$region0: #{tpu_custom_call.1}
  #allocation0 [shape = 'u32[]', space=smem, size = 0x4, offset = 0x4, fixed_abs, tag = 'smem constant byte address 0x4 - core index']
  #allocation1 [shape = 'u32[144,128]{1,0:T(1,128)}', space=vmem, size = 0x12000, scoped, tag = 'internal scratch']
  %s0 = inlined_call_operand.hbm [shape: f32[8,256], index: 0, kind: input, shape index: {}]
  %s1 = inlined_call_operand.vmem [shape: f32[1,256], index: 1, kind: input, shape index: {}]
  %s2 = inlined_call_operand.vmem [shape: f32[1,256], index: 2, kind: input, shape index: {}]
  %s3 = inlined_call_operand.hbm [shape: f32[8,256], index: 3, kind: output, shape index: {}]
  %s4 = sld [smem:[#allocation0]]
  $region26: #{tpu_custom_call.1} parent=0
    _
  %s6 = ssub.s32 1, %s4
  %s7 = scalar_select 0, %s6, %s4
  $region1: #{tpu_custom_call.1} parent=0
    #allocation2 [shape = 'u8[8192]{0}', space=vmem, size = 0x2000, scoped, tag = 'input window, operand 0, single buffered']
    #allocation3 [shape = 's32[1]{0}', space=sflag, size = 0x4, scoped, tag = 'scoped memory for tpu_custom_call.1']
    #allocation4 [shape = 's32[1]{0}', space=sflag, size = 0x4, scoped, tag = 'scoped memory for tpu_custom_call.1']
    #allocation5 [shape = 'u8[8192]{0}', space=vmem, size = 0x2000, scoped, tag = 'output window, operand 0, single buffered']
    %8 = vsyncpa [#allocation3], 0
    %9 = vsyncpa [#allocation4], 0
    // Predicated region
    $region2: #{tpu_custom_call.1} parent=1 // pred_check
      _
    $region3: #{tpu_custom_call.1} parent=1 // pred_check_branch
      %11 = sbr.rel (0) target = $region5
    $region4: #{tpu_custom_call.1} parent=1 // pred_region
      %s13 = ssub.s32 256, 256
      %14 = vsyncadd [#allocation3], %s13
      %s16 = sshll.u32 [#allocation2], 4
      %s17 = int_to_ptr.vmem [resolvable:$true] %s16
      %19 = dma.hbm_to_vmem [thread:$0]  %s0, 256, %s17, [#allocation3]
    $region5: #{tpu_custom_call.1} parent=1 // pred_fallthru
      _
    // Predicated region
    $region6: #{tpu_custom_call.1} parent=1 // pred_check
      _
    $region7: #{tpu_custom_call.1} parent=1 // pred_check_branch
      %21 = sbr.rel (0) target = $region9
    $region8: #{tpu_custom_call.1} parent=1 // pred_region
      _
    $region9: #{tpu_custom_call.1} parent=1 // pred_fallthru
      _
    // Predicated region
    $region10: #{tpu_custom_call.1} parent=1 // pred_check
      _
    $region11: #{tpu_custom_call.1} parent=1 // pred_check_branch
      %23 = sbr.rel (0) target = $region13
    $region12: #{tpu_custom_call.1} parent=1 // pred_region
      _
    $region13: #{tpu_custom_call.1} parent=1 // pred_fallthru
      _
    // Predicated region
    $region14: #{tpu_custom_call.1} parent=1 // pred_check
      _
    $region15: #{tpu_custom_call.1} parent=1 // pred_check_branch
      %25 = sbr.rel (0) target = $region17
    $region16: #{tpu_custom_call.1} parent=1 // pred_region
      %26 = dma.done [#allocation3], 256
    $region17: #{tpu_custom_call.1} parent=1 // pred_fallthru
      _
    %v27 = vld [vmem:[#allocation2] sm:$0xff]
    %v28 = vld [vmem:[#allocation2 + $0x8] sm:$0xff]
    %v29 = vld [vmem:[%s1] sm:$0x3]
    %v30 = vld [vmem:[%s2] sm:$0x3]
    %v31 = vmul.f32 %v30, %v30
    %v32 = vsub.f32 0.0, %v29
    %v33 = vmul.f32 %v32, 1.442695
    %v34 = vpow.pop %v33
    %v35 = vadd.f32 %v34, 1.0
    %v36 = vlog2.pop %v35
    %v37 = vmul.f32 %v36, 0.6931472
    %v38 = vsub.f32 0.0, %v37
    %v40 = vlaneseq
    %v41 = vshrl.u32 %v40, 7
    %v42 = vsub.s32 0, %v41
    %v43 = vrot.slane %v31, %v42
    %v44 = vlaneseq
    %v45 = vshrl.u32 %v44, 7
    %v46 = vsub.s32 1, %v45
    %v47 = vrot.slane %v31, %v46
    %v50 = vmul.f32 %v43, %v27
    %v51 = vmul.f32 %v47, %v28
    %v53 = vlaneseq
    %v54 = vshrl.u32 %v53, 7
    %v55 = vsub.s32 0, %v54
    %v56 = vrot.slane %v38, %v55
    %v57 = vlaneseq
    %v58 = vshrl.u32 %v57, 7
    %v59 = vsub.s32 1, %v58
    %v60 = vrot.slane %v38, %v59
    %v63 = vsub.f32 %v56, %v50
    %v64 = vsub.f32 %v60, %v51
    %v65 = vmul.f32 %v63, 1.442695
    %v66 = vpow.pop %v65
    %v67 = vmul.f32 %v64, 1.442695
    %v68 = vpow.pop %v67
    %v69 = vmax.f32 %v66, %v68
    %70 = vmax.xlane.f32.xlu0 %v69
    %v71 = vpop.xlane.xlu0 %70
    %v72 = vadd.f32 %v71, 0.0001
    %v73 = vrcp.pop %v72
    %v74 = vmul.f32 %v66, %v73
    %v75 = vmul.f32 %v68, %v73
    %76 = vst [vmem:[#allocation5] sm:$0xff] %v74
    %77 = vst [vmem:[#allocation5 + $0x8] sm:$0xff] %v75
    // Predicated region
    $region18: #{tpu_custom_call.1} parent=1 // pred_check
      _
    $region19: #{tpu_custom_call.1} parent=1 // pred_check_branch
      %79 = sbr.rel (0) target = $region21
    $region20: #{tpu_custom_call.1} parent=1 // pred_region
      %s81 = ssub.s32 256, 256
      %82 = vsyncadd [#allocation4], %s81
      %s84 = sshll.u32 [#allocation5], 4
      %s85 = int_to_ptr.vmem [resolvable:$true] %s84
      %87 = dma.vmem_to_hbm [thread:$0]  %s85, 256, %s3, [#allocation4]
    $region21: #{tpu_custom_call.1} parent=1 // pred_fallthru
      _
    // Predicated region
    $region22: #{tpu_custom_call.1} parent=1 // pred_check
      _
    $region23: #{tpu_custom_call.1} parent=1 // pred_check_branch
      %89 = sbr.rel (0) target = $region25
    $region24: #{tpu_custom_call.1} parent=1 // pred_region
      %90 = dma.done [#allocation4], 256
    $region25: #{tpu_custom_call.1} parent=1 // pred_fallthru
      _
    %91 = vsyncpa [#allocation3], 1
    %92 = vsyncpa [#allocation4], 1

</llo_original>
